<compile_context>
chip_gen: v7x
topology: tpu7x:2x2x1
jax: 0.10.0
libtpu: 0.0.40
codegen_flags: <defaults>
</compile_context>

<pallas_src>
import jax
import jax.numpy as jnp
from jax.experimental import pallas as pl
from jax.experimental.pallas import tpu as pltpu


def se_attention_kernel(x_ref, w1_ref, w2_ref, o_ref):
    # x_ref / o_ref: (B_TILE, C, HW)
    # w1_ref: (C + 1, Cr)  rows [0:C]  = fc1 weight^T, row C  = fc1 bias
    # w2_ref: (Cr + 1, C)  rows [0:Cr] = fc2 weight^T, row Cr = fc2 bias
    c = x_ref.shape[1]
    cr = w1_ref.shape[1]
    hw = x_ref.shape[2]

    x = x_ref[...]                                            # (BT, C, HW)

    # Global average pool over the spatial (lane) axis, in f32.  The 1/HW
    # factor is a compile-time constant, so this is one XLU reduce plus one
    # VPU scale per row.
    m = jnp.sum(x.astype(jnp.float32), axis=2) * jnp.float32(1.0 / hw)  # (BT, C)

    # fc1 (+ folded bias) + ReLU   -- batched over B_TILE, runs on the MXU.
    h = jnp.dot(m, w1_ref[:c, :], preferred_element_type=jnp.float32)
    h = jnp.maximum(h + w1_ref[c:c + 1, :], 0.0)              # (BT, Cr)

    # fc2 (+ folded bias) + sigmoid (sigmoid/exp -> EUP slot).
    s = jnp.dot(h, w2_ref[:cr, :], preferred_element_type=jnp.float32)
    s = jax.nn.sigmoid(s + w2_ref[cr:cr + 1, :])              # (BT, C)

    # Scale the input by the per-(batch, channel) SE weight (broadcast on HW).
    o_ref[...] = (x * s.astype(x.dtype)[:, :, None]).astype(o_ref.dtype)


def _pick_b_tile(B, C, HW, itemsize, target_bytes=4 << 20):
    """Largest batch tile (divisor of B) with block <= ~4 MiB; keep >=2 steps."""
    per_batch = C * HW * itemsize
    bt = max(1, min(B, target_bytes // max(per_batch, 1)))
    while B % bt:
        bt -= 1
    if bt == B and B >= 2:          # keep >= 2 grid steps for v7x's 2 TCs
        bt = B // 2
        while B % bt:
            bt -= 1
    return int(bt)


def se_attention(x_nchw, w1, b1, w2, b2):
    """x_nchw: (B, C, H, W).  w1: (Cr, C), b1: (Cr,), w2: (C, Cr), b2: (C,)."""
    B, C, H, W = x_nchw.shape
    Cr = w1.shape[0]
    HW = H * W

    x_flat = x_nchw.reshape(B, C, HW)          # contiguous glue reshape only
    # Fold weight + bias into one matrix each (bias as an extra row).
    w1_aug = jnp.concatenate([w1.T, b1[None, :]], axis=0).astype(jnp.float32)  # (C+1, Cr)
    w2_aug = jnp.concatenate([w2.T, b2[None, :]], axis=0).astype(jnp.float32)  # (Cr+1, C)

    b_tile = _pick_b_tile(B, C, HW, jnp.dtype(x_flat.dtype).itemsize)
    grid = (B // b_tile,)

    # Note: for best store bandwidth HW should be a multiple of 128 (lane-dense
    # unmasked stores); other HW values remain correct but use masked stores.
    out = pl.pallas_call(
        se_attention_kernel,
        out_shape=jax.ShapeDtypeStruct((B, C, HW), x_flat.dtype),
        grid_spec=pltpu.PrefetchScalarGridSpec(
            num_scalar_prefetch=0,
            grid=grid,
            in_specs=[
                pl.BlockSpec((b_tile, C, HW), lambda b: (b, 0, 0)),   # x tile
                pl.BlockSpec((C + 1, Cr), lambda b: (0, 0)),          # fc1 W^T | b1
                pl.BlockSpec((Cr + 1, C), lambda b: (0, 0)),          # fc2 W^T | b2
            ],
            out_specs=pl.BlockSpec((b_tile, C, HW), lambda b: (b, 0, 0)),
        ),
        compiler_params=pltpu.CompilerParams(
            dimension_semantics=("parallel",)),
        input_output_aliases={0: 0},   # x block fully read before its store
    )(x_flat, w1_aug, w2_aug)

    return out.reshape(B, C, H, W)


def se_attention_ref(x, w1, b1, w2, b2):
    """Pure-JAX reference mirroring the PyTorch forward."""
    m = jnp.mean(x, axis=(2, 3), keepdims=True)                       # (B,C,1,1)
    h = jnp.einsum('oc,bcij->boij', w1, m) + b1[None, :, None, None]  # fc1
    h = jnp.maximum(h, 0.0)
    s = jnp.einsum('oc,bcij->boij', w2, h) + b2[None, :, None, None]  # fc2
    s = jax.nn.sigmoid(s)
    return x * s


if __name__ == "__main__":
    # Small shapes consistent with SEAttention(in_channels=64, reduction=16).
    # H = W = 16 so HW = 256 (lane-dense, 2 x 128); B = 4 -> 2 parallel steps.
    B, C, H, W = 4, 64, 16, 16
    reduction = 16
    Cr = C // reduction  # 4

    key = jax.random.PRNGKey(0)
    kx, k1, k2, k3, k4 = jax.random.split(key, 5)

    x = jax.random.normal(kx, (B, C, H, W), dtype=jnp.float32)
    # nn.Conv2d(C, Cr, 1) weight (Cr, C, 1, 1) -> (Cr, C); bias (Cr,)
    w1 = jax.random.normal(k1, (Cr, C), dtype=jnp.float32) * 0.1
    b1 = jax.random.normal(k2, (Cr,), dtype=jnp.float32) * 0.1
    # nn.Conv2d(Cr, C, 1) weight (C, Cr, 1, 1) -> (C, Cr); bias (C,)
    w2 = jax.random.normal(k3, (C, Cr), dtype=jnp.float32) * 0.1
    b2 = jax.random.normal(k4, (C,), dtype=jnp.float32) * 0.1

    se_fn = jax.jit(se_attention)
    out = se_fn(x, w1, b1, w2, b2)
    out = jax.block_until_ready(out)

    ref = se_attention_ref(x, w1, b1, w2, b2)
    assert out.shape == (B, C, H, W)
    assert jnp.allclose(out, ref, atol=1e-5, rtol=1e-5)

    print("KERNEL_OK")
</pallas_src>

<mosaic_0001>
module attributes {stable_mosaic.version = 11 : i64} {
  func.func @se_attention_kernel(%arg0: i32, %arg1: memref<2x64x256xf32, #tpu.memory_space<vmem>>, %arg2: memref<65x4xf32, #tpu.memory_space<vmem>>, %arg3: memref<5x64xf32, #tpu.memory_space<vmem>>, %arg4: memref<2x64x256xf32, #tpu.memory_space<vmem>>) attributes {dimension_semantics = [#tpu.dimension_semantics<parallel>], iteration_bounds = array<i64: 2>, scalar_prefetch = 0 : i64, scratch_operands = 0 : i64, tpu.core_type = #tpu.core_type<tc>, window_params = [{transform_indices = @transform_0, window_bounds = array<i64: 2, 64, 256>}, {pipeline_mode = #tpu.pipeline_mode<synchronous>, transform_indices = @transform_1, window_bounds = array<i64: 65, 4>}, {pipeline_mode = #tpu.pipeline_mode<synchronous>, transform_indices = @transform_2, window_bounds = array<i64: 5, 64>}, {transform_indices = @transform_3, window_bounds = array<i64: 2, 64, 256>}]} {
    %c0 = arith.constant 0 : index
    %c0_0 = arith.constant 0 : index
    %c0_1 = arith.constant 0 : index
    %0 = vector.load %arg1[%c0, %c0_0, %c0_1] : memref<2x64x256xf32, #tpu.memory_space<vmem>>, vector<2x64x256xf32>
    %cst = arith.constant dense<0.000000e+00> : vector<2x64xf32>
    %1 = vector.multi_reduction <add>, %0, %cst [2] : vector<2x64x256xf32> to vector<2x64xf32>
    %cst_2 = arith.constant 3.906250e-03 : f32
    %2 = vector.broadcast %cst_2 : f32 to vector<2x64xf32>
    %3 = arith.mulf %1, %2 : vector<2x64xf32>
    %c0_3 = arith.constant 0 : index
    %c0_4 = arith.constant 0 : index
    %4 = vector.load %arg2[%c0_3, %c0_4] : memref<65x4xf32, #tpu.memory_space<vmem>>, vector<64x4xf32>
    %cst_5 = arith.constant dense<0.000000e+00> : vector<2x4xf32>
    %5 = tpu.matmul %3, %4, %cst_5 {dimension_numbers = #tpu.dot_dimension_numbers<[1], [0], [0], [1], [0, 0, 1, 1], [], []>} : vector<2x64xf32>, vector<64x4xf32>, vector<2x4xf32> -> vector<2x4xf32>
    %c64 = arith.constant 64 : index
    %c0_6 = arith.constant 0 : index
    %6 = vector.load %arg2[%c64, %c0_6] : memref<65x4xf32, #tpu.memory_space<vmem>>, vector<1x4xf32>
    %7 = vector.broadcast %6 : vector<1x4xf32> to vector<2x4xf32>
    %8 = arith.addf %5, %7 : vector<2x4xf32>
    %cst_7 = arith.constant 0.000000e+00 : f32
    %9 = vector.broadcast %cst_7 : f32 to vector<2x4xf32>
    %10 = arith.maximumf %8, %9 : vector<2x4xf32>
    %c0_8 = arith.constant 0 : index
    %c0_9 = arith.constant 0 : index
    %11 = vector.load %arg3[%c0_8, %c0_9] : memref<5x64xf32, #tpu.memory_space<vmem>>, vector<4x64xf32>
    %cst_10 = arith.constant dense<0.000000e+00> : vector<2x64xf32>
    %12 = tpu.matmul %10, %11, %cst_10 {dimension_numbers = #tpu.dot_dimension_numbers<[1], [0], [0], [1], [0, 0, 1, 1], [], []>} : vector<2x4xf32>, vector<4x64xf32>, vector<2x64xf32> -> vector<2x64xf32>
    %c4 = arith.constant 4 : index
    %c0_11 = arith.constant 0 : index
    %13 = vector.load %arg3[%c4, %c0_11] : memref<5x64xf32, #tpu.memory_space<vmem>>, vector<1x64xf32>
    %14 = vector.broadcast %13 : vector<1x64xf32> to vector<2x64xf32>
    %15 = arith.addf %12, %14 : vector<2x64xf32>
    %16 = arith.negf %15 : vector<2x64xf32>
    %17 = math.exp %16 : vector<2x64xf32>
    %cst_12 = arith.constant 1.000000e+00 : f32
    %18 = vector.broadcast %cst_12 : f32 to vector<2x64xf32>
    %19 = arith.addf %18, %17 : vector<2x64xf32>
    %20 = arith.divf %18, %19 : vector<2x64xf32>
    %21 = vector.shape_cast %20 : vector<2x64xf32> to vector<2x64x1xf32>
    %22 = vector.broadcast %21 : vector<2x64x1xf32> to vector<2x64x256xf32>
    %23 = arith.mulf %0, %22 : vector<2x64x256xf32>
    %c0_13 = arith.constant 0 : index
    %c0_14 = arith.constant 0 : index
    %c0_15 = arith.constant 0 : index
    %24 = vector.load %arg4[%c0_13, %c0_14, %c0_15] : memref<2x64x256xf32, #tpu.memory_space<vmem>>, vector<2x64x256xf32>
    tpu.vector_store %arg4[%c0_13, %c0_14, %c0_15], %23 {strides = array<i32>} : memref<2x64x256xf32, #tpu.memory_space<vmem>>, vector<2x64x256xf32>,
    return
  }
  func.func @transform_0(%arg0: i32) -> (i32, i32, i32) {
    %c0_i32 = arith.constant 0 : i32
    %c0_i32_0 = arith.constant 0 : i32
    %c0_i32_1 = arith.constant 0 : i32
    return %arg0, %c0_i32, %c0_i32_0 : i32, i32, i32
  }
  func.func @transform_1(%arg0: i32) -> (i32, i32) {
    %c0_i32 = arith.constant 0 : i32
    %c0_i32_0 = arith.constant 0 : i32
    %c0_i32_1 = arith.constant 0 : i32
    return %c0_i32, %c0_i32_0 : i32, i32
  }
  func.func @transform_2(%arg0: i32) -> (i32, i32) {
    %c0_i32 = arith.constant 0 : i32
    %c0_i32_0 = arith.constant 0 : i32
    %c0_i32_1 = arith.constant 0 : i32
    return %c0_i32, %c0_i32_0 : i32, i32
  }
  func.func @transform_3(%arg0: i32) -> (i32, i32, i32) {
    %c0_i32 = arith.constant 0 : i32
    %c0_i32_0 = arith.constant 0 : i32
    %c0_i32_1 = arith.constant 0 : i32
    return %arg0, %c0_i32, %c0_i32_0 : i32, i32, i32
  }
}

</mosaic_0001>

<llo_original>
// kernel: se_attention.1
$region0: #{se_attention.1}
  #allocation0 [shape = 'u32[]', space=smem, size = 0x4, offset = 0x4, fixed_abs, tag = 'smem constant byte address 0x4 - core index']
  #allocation1 [shape = 'u32[144,128]{1,0:T(1,128)}', space=vmem, size = 0x12000, scoped, tag = 'internal scratch']
  %s0 = inlined_call_operand.vmem [shape: f32[4,64,256], index: 0, kind: input, shape index: {}, may-alias: {0,3}]
  %s1 = inlined_call_operand.vmem [shape: f32[65,4], index: 1, kind: input, shape index: {}]
  %s2 = inlined_call_operand.vmem [shape: f32[5,64], index: 2, kind: input, shape index: {}]
  %s3 = inlined_call_operand.vmem [shape: f32[4,64,256], index: 3, kind: output, shape index: {}, may-alias: {0,3}]
  %s4 = sld [smem:[#allocation0]]
  $region45: #{se_attention.1} parent=0
    _
  %s6 = ssub.s32 1, %s4
  %s7 = scalar_select 0, %s6, %s4
  loop: start=0, step=1, limit=4
  $region2: #{se_attention.1} parent=0 // loop_pre_header
    _
  $region3: #{se_attention.1} parent=0 // loop_header
    %s9 = sphi 0, %s13
    %p10 = scmp.ge.s32.totalorder %s9, 4
    %s19 = sphi 0, %s21
    %s22 = sphi 0, %s19
    %s23 = sphi 0, %s22
    %s39 = sphi 0, %s23
    %s43 = sphi 0, %s43
    %s45 = sphi 0, %s43
    %s46 = sphi 0, %s45
    %s60 = sphi 0, %s46
    %s64 = sphi 0, %s64
    %s66 = sphi 0, %s64
    %s67 = sphi 0, %s66
    %s81 = sphi 0, %s67
    %s87 = sphi 0, %s89
    %s90 = sphi 0, %s87
    %s91 = sphi 0, %s90
    %s107 = sphi 0, %s91
  $region4: #{se_attention.1} parent=0 // loop_header_branch
    %12 = sbr.rel (%p10) target = $region8
  $region5: #{se_attention.1} parent=0 // loop_body
    %s14 = ssub.s32 %s9, 1
    %s15 = ssub.s32 %s9, 2
    %s16 = sadd.s32 %s9, 1
    %s17 = ssub.s32 %s9, %s16
    %p18 = scmp.eq.s32.totalorder %s17, 0
    %s20 = sadd.s32 %s19, 1
    %s21 = scalar_select %p18, %s19, %s20
    %p24 = pneg %p18
    %p25 = scmp.eq.s32.totalorder %s9, 1
    %p26 = por %p24, %p25
    %p27 = scmp.ne.s32.totalorder %s19, %s22
    %p28 = scmp.eq.s32.totalorder %s9, 0
    %p29 = por %p27, %p28
    %p30 = scmp.ne.s32.totalorder %s19, %s22
    %p31 = scmp.eq.s32.totalorder %s14, 1
    %p32 = por %p30, %p31
    %p33 = scmp.ne.s32.totalorder %s22, %s23
    %p34 = scmp.eq.s32.totalorder %s14, 0
    %p35 = por %p33, %p34
    %p36 = scmp.ne.s32.totalorder %s22, %s23
    %p37 = scmp.eq.s32.totalorder %s15, 1
    %p38 = por %p36, %p37
    %p40 = scmp.ne.s32.totalorder %s23, %s39
    %p41 = scmp.eq.s32.totalorder %s15, 0
    %p42 = por %p40, %p41
    %s44 = sadd.s32 %s43, 1
    %p47 = scmp.eq.s32.totalorder %s9, 1
    %p48 = scmp.ne.s32.totalorder %s43, %s45
    %p49 = scmp.eq.s32.totalorder %s9, 0
    %p50 = por %p48, %p49
    %p51 = scmp.ne.s32.totalorder %s43, %s45
    %p52 = scmp.eq.s32.totalorder %s14, 1
    %p53 = por %p51, %p52
    %p54 = scmp.ne.s32.totalorder %s45, %s46
    %p55 = scmp.eq.s32.totalorder %s14, 0
    %p56 = por %p54, %p55
    %p57 = scmp.ne.s32.totalorder %s45, %s46
    %p58 = scmp.eq.s32.totalorder %s15, 1
    %p59 = por %p57, %p58
    %p61 = scmp.ne.s32.totalorder %s46, %s60
    %p62 = scmp.eq.s32.totalorder %s15, 0
    %p63 = por %p61, %p62
    %s65 = sadd.s32 %s64, 1
    %p68 = scmp.eq.s32.totalorder %s9, 1
    %p69 = scmp.ne.s32.totalorder %s64, %s66
    %p70 = scmp.eq.s32.totalorder %s9, 0
    %p71 = por %p69, %p70
    %p72 = scmp.ne.s32.totalorder %s64, %s66
    %p73 = scmp.eq.s32.totalorder %s14, 1
    %p74 = por %p72, %p73
    %p75 = scmp.ne.s32.totalorder %s66, %s67
    %p76 = scmp.eq.s32.totalorder %s14, 0
    %p77 = por %p75, %p76
    %p78 = scmp.ne.s32.totalorder %s66, %s67
    %p79 = scmp.eq.s32.totalorder %s15, 1
    %p80 = por %p78, %p79
    %p82 = scmp.ne.s32.totalorder %s67, %s81
    %p83 = scmp.eq.s32.totalorder %s15, 0
    %p84 = por %p82, %p83
    %s85 = ssub.s32 %s9, %s16
    %p86 = scmp.eq.s32.totalorder %s85, 0
    %s88 = sadd.s32 %s87, 1
    %s89 = scalar_select %p86, %s87, %s88
    %p92 = pneg %p86
    %p93 = scmp.eq.s32.totalorder %s9, 1
    %p94 = por %p92, %p93
    %p95 = scmp.ne.s32.totalorder %s87, %s90
    %p96 = scmp.eq.s32.totalorder %s9, 0
    %p97 = por %p95, %p96
    %p98 = scmp.ne.s32.totalorder %s87, %s90
    %p99 = scmp.eq.s32.totalorder %s14, 1
    %p100 = por %p98, %p99
    %p101 = scmp.ne.s32.totalorder %s90, %s91
    %p102 = scmp.eq.s32.totalorder %s14, 0
    %p103 = por %p101, %p102
    %p104 = scmp.ne.s32.totalorder %s90, %s91
    %p105 = scmp.eq.s32.totalorder %s15, 1
    %p106 = por %p104, %p105
    %p108 = scmp.ne.s32.totalorder %s91, %s107
    %p109 = scmp.eq.s32.totalorder %s15, 0
    %p110 = por %p108, %p109
    %p111 = scmp.le.s32.totalorder 1, %s9
    %p112 = scmp.lt.s32.totalorder %s9, 3
    %p113 = pnand %p111, %p112
    %p114 = pneg %p113
    // Predicated region
    $region9: #{se_attention.1} parent=5 // pred_check
      _
    $region10: #{se_attention.1} parent=5 // pred_check_branch
      %116 = sbr.rel (%p113) target = $region12
    $region11: #{se_attention.1} parent=5 // pred_region
      %s117 = ssub.s32 %s9, 1
      // Predicated region
      $region13: #{se_attention.1} parent=11 // pred_check
        %p118 = pneg %p56
      $region14: #{se_attention.1} parent=11 // pred_check_branch
        %120 = sbr.rel (%p118) target = $region16
      $region15: #{se_attention.1} parent=11 // pred_region
        _
      $region16: #{se_attention.1} parent=11 // pred_fallthru
        _
      // Predicated region
      $region17: #{se_attention.1} parent=11 // pred_check
        %p121 = pneg %p77
      $region18: #{se_attention.1} parent=11 // pred_check_branch
        %123 = sbr.rel (%p121) target = $region20
      $region19: #{se_attention.1} parent=11 // pred_region
        _
      $region20: #{se_attention.1} parent=11 // pred_fallthru
        _
    $region12: #{se_attention.1} parent=5 // pred_fallthru
      _
    %p124 = scmp.lt.s32.totalorder %s9, 2
    // Predicated region
    $region21: #{se_attention.1} parent=5 // pred_check
      %p125 = pneg %p124
    $region22: #{se_attention.1} parent=5 // pred_check_branch
      %127 = sbr.rel (%p125) target = $region24
    $region23: #{se_attention.1} parent=5 // pred_region
      // Predicated region
      $region25: #{se_attention.1} parent=23 // pred_check
        %p128 = pneg %p29
      $region26: #{se_attention.1} parent=23 // pred_check_branch
        %130 = sbr.rel (%p128) target = $region28
      $region27: #{se_attention.1} parent=23 // pred_region
        %s131 = smul.u32 2, %s9
        %p132 = scmp.lt.s32.totalorder %s131, 3
        %s133 = scalar_select %p132, %s131, 3
        %s134 = smul.addr %s133, 16
        %s135 = smul.addr %s134, 8
        %s136 = scalar_lea.vmem %s0, %s135
        %s137 = smul.u32 2, %s9
      $region28: #{se_attention.1} parent=23 // pred_fallthru
        _
    $region24: #{se_attention.1} parent=5 // pred_fallthru
      _
    %p138 = scmp.le.s32.totalorder 1, %s9
    %p139 = scmp.lt.s32.totalorder %s9, 3
    %p140 = pnand %p138, %p139
    %p141 = pneg %p140
    // Predicated region
    $region29: #{se_attention.1} parent=5 // pred_check
      _
    $region30: #{se_attention.1} parent=5 // pred_check_branch
      %143 = sbr.rel (%p140) target = $region32
    $region31: #{se_attention.1} parent=5 // pred_region
      %s144 = ssub.s32 %s9, 1
      %s145 = smul.u32 2, %s14
      %p146 = scmp.lt.s32.totalorder %s145, 3
      %s147 = scalar_select %p146, %s145, 3
      %s148 = smul.addr %s147, 16
      %s149 = smul.addr %s148, 8
      %s150 = scalar_lea.vmem %s0, %s149
      %p151 = pneg %p35
      %p152 = pneg %p32
      %p153 = pneg %p56
      %p154 = pneg %p53
      %p155 = pneg %p77
      %p156 = pneg %p74
      %p157 = pneg %p103
      %p158 = pneg %p100
      %s159 = smul.u32 2, %s14
      %p160 = scmp.lt.s32.totalorder %s159, 3
      %s161 = scalar_select %p160, %s159, 3
      %s162 = smul.addr %s161, 16
      %s163 = smul.addr %s162, 8
      %s164 = scalar_lea.vmem %s3, %s163
      %s165 = smul.u32 2, %s14
      %p166 = scmp.lt.s32.totalorder %s165, 3
      %s167 = scalar_select %p166, %s165, 3
      %s168 = smul.addr %s167, 16
      %s169 = smul.addr %s168, 8
      %s170 = scalar_lea.vmem %s0, %s169
      %s171 = smul.u32 2, %s14
      %s172 = smul.u32 2, %s14
      %p173 = scmp.lt.s32.totalorder %s172, 3
      %s174 = scalar_select %p173, %s172, 3
      %s175 = smul.addr %s174, 16
      %s176 = smul.addr %s175, 8
      %s177 = scalar_lea.vmem %s3, %s176
      %s178 = smul.u32 2, %s14
      %v179 = vld [vmem:[%s170] sm:$0xff]
      %v180 = vld [vmem:[%s170 + $0x8] sm:$0xff]
      %v181 = vld [vmem:[%s170 + $0x10] sm:$0xff]
      %v182 = vld [vmem:[%s170 + $0x18] sm:$0xff]
      %v183 = vld [vmem:[%s170 + $0x20] sm:$0xff]
      %v184 = vld [vmem:[%s170 + $0x28] sm:$0xff]
      %v185 = vld [vmem:[%s170 + $0x30] sm:$0xff]
      %v186 = vld [vmem:[%s170 + $0x38] sm:$0xff]
      %v187 = vld [vmem:[%s170 + $0x40] sm:$0xff]
      %v188 = vld [vmem:[%s170 + $0x48] sm:$0xff]
      %v189 = vld [vmem:[%s170 + $0x50] sm:$0xff]
      %v190 = vld [vmem:[%s170 + $0x58] sm:$0xff]
      %v191 = vld [vmem:[%s170 + $0x60] sm:$0xff]
      %v192 = vld [vmem:[%s170 + $0x68] sm:$0xff]
      %v193 = vld [vmem:[%s170 + $0x70] sm:$0xff]
      %v194 = vld [vmem:[%s170 + $0x78] sm:$0xff]
      %v195 = vld [vmem:[%s170 + $0x80] sm:$0xff]
      %v196 = vld [vmem:[%s170 + $0x88] sm:$0xff]
      %v197 = vld [vmem:[%s170 + $0x90] sm:$0xff]
      %v198 = vld [vmem:[%s170 + $0x98] sm:$0xff]
      %v199 = vld [vmem:[%s170 + $0xa0] sm:$0xff]
      %v200 = vld [vmem:[%s170 + $0xa8] sm:$0xff]
      %v201 = vld [vmem:[%s170 + $0xb0] sm:$0xff]
      %v202 = vld [vmem:[%s170 + $0xb8] sm:$0xff]
      %v203 = vld [vmem:[%s170 + $0xc0] sm:$0xff]
      %v204 = vld [vmem:[%s170 + $0xc8] sm:$0xff]
      %v205 = vld [vmem:[%s170 + $0xd0] sm:$0xff]
      %v206 = vld [vmem:[%s170 + $0xd8] sm:$0xff]
      %v207 = vld [vmem:[%s170 + $0xe0] sm:$0xff]
      %v208 = vld [vmem:[%s170 + $0xe8] sm:$0xff]
      %v209 = vld [vmem:[%s170 + $0xf0] sm:$0xff]
      %v210 = vld [vmem:[%s170 + $0xf8] sm:$0xff]
      %v211 = vadd.f32 %v179, %v180
      %212 = vadd.xlane.f32.xlu0 %v211
      %v213 = vpop.xlane.xlu0 %212
      %v214 = vadd.f32 %v181, %v182
      %215 = vadd.xlane.f32.xlu0 %v214
      %v216 = vpop.xlane.xlu0 %215
      %v217 = vadd.f32 %v183, %v184
      %218 = vadd.xlane.f32.xlu0 %v217
      %v219 = vpop.xlane.xlu0 %218
      %v220 = vadd.f32 %v185, %v186
      %221 = vadd.xlane.f32.xlu0 %v220
      %v222 = vpop.xlane.xlu0 %221
      %v223 = vadd.f32 %v187, %v188
      %224 = vadd.xlane.f32.xlu0 %v223
      %v225 = vpop.xlane.xlu0 %224
      %v226 = vadd.f32 %v189, %v190
      %227 = vadd.xlane.f32.xlu0 %v226
      %v228 = vpop.xlane.xlu0 %227
      %v229 = vadd.f32 %v191, %v192
      %230 = vadd.xlane.f32.xlu0 %v229
      %v231 = vpop.xlane.xlu0 %230
      %v232 = vadd.f32 %v193, %v194
      %233 = vadd.xlane.f32.xlu0 %v232
      %v234 = vpop.xlane.xlu0 %233
      %v235 = vadd.f32 %v195, %v196
      %236 = vadd.xlane.f32.xlu0 %v235
      %v237 = vpop.xlane.xlu0 %236
      %v238 = vadd.f32 %v197, %v198
      %239 = vadd.xlane.f32.xlu0 %v238
      %v240 = vpop.xlane.xlu0 %239
      %v241 = vadd.f32 %v199, %v200
      %242 = vadd.xlane.f32.xlu0 %v241
      %v243 = vpop.xlane.xlu0 %242
      %v244 = vadd.f32 %v201, %v202
      %245 = vadd.xlane.f32.xlu0 %v244
      %v246 = vpop.xlane.xlu0 %245
      %v247 = vadd.f32 %v203, %v204
      %248 = vadd.xlane.f32.xlu0 %v247
      %v249 = vpop.xlane.xlu0 %248
      %v250 = vadd.f32 %v205, %v206
      %251 = vadd.xlane.f32.xlu0 %v250
      %v252 = vpop.xlane.xlu0 %251
      %v253 = vadd.f32 %v207, %v208
      %254 = vadd.xlane.f32.xlu0 %v253
      %v255 = vpop.xlane.xlu0 %254
      %v256 = vadd.f32 %v209, %v210
      %257 = vadd.xlane.f32.xlu0 %v256
      %v258 = vpop.xlane.xlu0 %257
      %v259 = vmul.f32 %v213, 0.00390625
      %v260 = vmul.f32 %v216, 0.00390625
      %v261 = vmul.f32 %v219, 0.00390625
      %v262 = vmul.f32 %v222, 0.00390625
      %v263 = vmul.f32 %v225, 0.00390625
      %v264 = vmul.f32 %v228, 0.00390625
      %v265 = vmul.f32 %v231, 0.00390625
      %v266 = vmul.f32 %v234, 0.00390625
      %v267 = vmul.f32 %v237, 0.00390625
      %v268 = vmul.f32 %v240, 0.00390625
      %v269 = vmul.f32 %v243, 0.00390625
      %v270 = vmul.f32 %v246, 0.00390625
      %v271 = vmul.f32 %v249, 0.00390625
      %v272 = vmul.f32 %v252, 0.00390625
      %v273 = vmul.f32 %v255, 0.00390625
      %v274 = vmul.f32 %v258, 0.00390625
      %v275 = vld [vmem:[%s1] sm:$0xff]
      %v276 = vld [vmem:[%s1 + $0x8] sm:$0xff]
      %v277 = vld [vmem:[%s1 + $0x10] sm:$0xff]
      %v278 = vld [vmem:[%s1 + $0x18] sm:$0xff]
      %v279 = vld [vmem:[%s1 + $0x20] sm:$0xff]
      %v280 = vld [vmem:[%s1 + $0x28] sm:$0xff]
      %v281 = vld [vmem:[%s1 + $0x30] sm:$0xff]
      %v282 = vld [vmem:[%s1 + $0x38] sm:$0xff]
      %v283 = vld [vmem:[%s1 + $0x40] sm:$0x1]
      %v284 = vlaneseq
      %v285 = vshrl.u32 %v284, 7
      %v286 = vsub.s32 0, %v285
      %v287 = vrot.slane %v283, %v286
      %v304 = vlaneseq
      %v305 = vand.u32 %v304, 127
      %v306 = vlaneseq
      %v307 = vshrl.u32 %v306, 7
      %v308 = vsub.s32 %v305, %v307
      %v309 = vrot.slane %v259, %v308
      %v310 = vadd.s32 %v305, 4294967288
      %v311 = vlaneseq
      %v312 = vshrl.u32 %v311, 7
      %v313 = vsub.s32 %v310, %v312
      %v314 = vrot.slane %v260, %v313
      %vm315 = vcmask 130112
      %v316 = vsel %vm315, %v314, %v309
      %v317 = vadd.s32 %v305, 4294967280
      %v318 = vlaneseq
      %v319 = vshrl.u32 %v318, 7
      %v320 = vsub.s32 %v317, %v319
      %v321 = vrot.slane %v261, %v320
      %vm322 = vcmask 195712
      %v323 = vsel %vm322, %v321, %v316
      %v324 = vadd.s32 %v305, 4294967272
      %v325 = vlaneseq
      %v326 = vshrl.u32 %v325, 7
      %v327 = vsub.s32 %v324, %v326
      %v328 = vrot.slane %v262, %v327
      %vm329 = vcmask 261312
      %v330 = vsel %vm329, %v328, %v323
      %v331 = vadd.s32 %v305, 4294967264
      %v332 = vlaneseq
      %v333 = vshrl.u32 %v332, 7
      %v334 = vsub.s32 %v331, %v333
      %v335 = vrot.slane %v263, %v334
      %vm336 = vcmask 326912
      %v337 = vsel %vm336, %v335, %v330
      %v338 = vadd.s32 %v305, 4294967256
      %v339 = vlaneseq
      %v340 = vshrl.u32 %v339, 7
      %v341 = vsub.s32 %v338, %v340
      %v342 = vrot.slane %v264, %v341
      %vm343 = vcmask 392512
      %v344 = vsel %vm343, %v342, %v337
      %v345 = vadd.s32 %v305, 4294967248
      %v346 = vlaneseq
      %v347 = vshrl.u32 %v346, 7
      %v348 = vsub.s32 %v345, %v347
      %v349 = vrot.slane %v265, %v348
      %vm350 = vcmask 458112
      %v351 = vsel %vm350, %v349, %v344
      %v352 = vadd.s32 %v305, 4294967240
      %v353 = vlaneseq
      %v354 = vshrl.u32 %v353, 7
      %v355 = vsub.s32 %v352, %v354
      %v356 = vrot.slane %v266, %v355
      %vm357 = vcmask 523712
      %v358 = vsel %vm357, %v356, %v351
      %v359 = vlaneseq
      %v360 = vshrl.u32 %v359, 7
      %v361 = vsub.s32 %v305, %v360
      %v362 = vrot.slane %v267, %v361
      %v363 = vlaneseq
      %v364 = vshrl.u32 %v363, 7
      %v365 = vsub.s32 %v310, %v364
      %v366 = vrot.slane %v268, %v365
      %v367 = vsel %vm315, %v366, %v362
      %v368 = vlaneseq
      %v369 = vshrl.u32 %v368, 7
      %v370 = vsub.s32 %v317, %v369
      %v371 = vrot.slane %v269, %v370
      %v372 = vsel %vm322, %v371, %v367
      %v373 = vlaneseq
      %v374 = vshrl.u32 %v373, 7
      %v375 = vsub.s32 %v324, %v374
      %v376 = vrot.slane %v270, %v375
      %v377 = vsel %vm329, %v376, %v372
      %v378 = vlaneseq
      %v379 = vshrl.u32 %v378, 7
      %v380 = vsub.s32 %v331, %v379
      %v381 = vrot.slane %v271, %v380
      %v382 = vsel %vm336, %v381, %v377
      %v383 = vlaneseq
      %v384 = vshrl.u32 %v383, 7
      %v385 = vsub.s32 %v338, %v384
      %v386 = vrot.slane %v272, %v385
      %v387 = vsel %vm343, %v386, %v382
      %v388 = vlaneseq
      %v389 = vshrl.u32 %v388, 7
      %v390 = vsub.s32 %v345, %v389
      %v391 = vrot.slane %v273, %v390
      %v392 = vsel %vm350, %v391, %v387
      %v393 = vlaneseq
      %v394 = vshrl.u32 %v393, 7
      %v395 = vsub.s32 %v352, %v394
      %v396 = vrot.slane %v274, %v395
      %v397 = vsel %vm357, %v396, %v392
      %vm398 = vcmask 1041409
      %v399 = vsel %vm398, %v397, %v358
      %vm400 = vcmask 523264
      %v401 = vsel %vm400, %v399, 0
      %403 = vmatprep.subr.mxu0 0.0
      %404 = vmatpush1.msra.mxu0 %v275
      %405 = vmatprep.subr.mxu0 0.0
      %406 = vmatpush1.msra.mxu0 %v276
      %407 = vmatprep.subr.mxu0 0.0
      %408 = vmatpush1.msra.mxu0 %v277
      %409 = vmatprep.subr.mxu0 0.0
      %410 = vmatpush1.msra.mxu0 %v278
      %411 = vmatprep.subr.mxu0 0.0
      %412 = vmatpush1.msra.mxu0 %v279
      %413 = vmatprep.subr.mxu0 0.0
      %414 = vmatpush1.msra.mxu0 %v280
      %415 = vmatprep.subr.mxu0 0.0
      %416 = vmatpush1.msra.mxu0 %v281
      %417 = vmatprep.subr.mxu0 0.0
      %418 = vmatpush1.msra.mxu0 %v282
      %419 = vmatprep.subr.mxu0 0.0
      %420 = vmatpush1.msra.mxu0 0.0
      %421 = vmatprep.subr.mxu0 0.0
      %422 = vmatpush1.msra.mxu0 0.0
      %423 = vmatprep.subr.mxu0 0.0
      %424 = vmatpush1.msra.mxu0 0.0
      %425 = vmatprep.subr.mxu0 0.0
      %426 = vmatpush1.msra.mxu0 0.0
      %427 = vmatprep.subr.mxu0 0.0
      %428 = vmatpush1.msra.mxu0 0.0
      %429 = vmatprep.subr.mxu0 0.0
      %430 = vmatpush1.msra.mxu0 0.0
      %431 = vmatprep.subr.mxu0 0.0
      %432 = vmatpush1.msra.mxu0 0.0
      %433 = vmatprep.subr.mxu0 0.0
      %434 = vmatpush1.msra.mxu0 0.0
      %435 = vmatprep.subr.mxu0 0.0
      %436 = vmatpush1.msra.mxu0 0.0
      %437 = vmatprep.subr.mxu0 0.0
      %438 = vmatpush1.msra.mxu0 0.0
      %439 = vmatprep.subr.mxu0 0.0
      %440 = vmatpush1.msra.mxu0 0.0
      %441 = vmatprep.subr.mxu0 0.0
      %442 = vmatpush1.msra.mxu0 0.0
      %443 = vmatprep.subr.mxu0 0.0
      %444 = vmatpush1.msra.mxu0 0.0
      %445 = vmatprep.subr.mxu0 0.0
      %446 = vmatpush1.msra.mxu0 0.0
      %447 = vmatprep.subr.mxu0 0.0
      %448 = vmatpush1.msra.mxu0 0.0
      %449 = vmatprep.subr.mxu0 0.0
      %450 = vmatpush1.msra.mxu0 0.0
      %451 = vmatprep.subr.mxu0 0.0
      %452 = vmatpush1.msra.mxu0 0.0
      %453 = vmatprep.subr.mxu0 0.0
      %454 = vmatpush1.msra.mxu0 0.0
      %455 = vmatprep.subr.mxu0 0.0
      %456 = vmatpush1.msra.mxu0 0.0
      %457 = vmatprep.subr.mxu0 0.0
      %458 = vmatpush1.msra.mxu0 0.0
      %459 = vmatprep.subr.mxu0 0.0
      %460 = vmatpush1.msra.mxu0 0.0
      %461 = vmatprep.subr.mxu0 0.0
      %462 = vmatpush1.msra.mxu0 0.0
      %463 = vmatprep.subr.mxu0 0.0
      %464 = vmatpush1.msra.mxu0 0.0
      %465 = vmatprep.subr.mxu0 0.0
      %466 = vmatpush1.msra.mxu0 0.0
      %467 = vmatprep.mubr.f32.mxu0 0.0
      %468 = vmatmul.mubr.f32.gmra.mrb[0].mxu0 %v401
      %v469 = vpop.f32.mrb[0].mxu0
      %v470 = vadd.f32 %v287, %v469
      %v471 = vpop.f32.mrb[0].mxu0
      %472 = vdwg.mxu0
      %v473 = vmax.f32 %v470, 0.0
      %v474 = vld [vmem:[%s2] sm:$0xf]
      %v475 = vld [vmem:[%s2 + $0x4] sm:$0x1]
      %v476 = vlaneseq
      %v477 = vshrl.u32 %v476, 7
      %v478 = vsub.s32 0, %v477
      %v479 = vrot.slane %v475, %v478
      %vm480 = vcmask 31744
      %v482 = vsel %vm480, %v473, 0
      %vm484 = vcmask 1043456
      %v486 = vsel %vm484, %v474, 0
      %488 = vmatprep.subr.mxu0 0.0
      %489 = vmatpush1.msra.mxu0 %v486
      %490 = vmatprep.subr.mxu0 0.0
      %491 = vmatpush1.msra.mxu0 0.0
      %492 = vmatprep.subr.mxu0 0.0
      %493 = vmatpush1.msra.mxu0 0.0
      %494 = vmatprep.subr.mxu0 0.0
      %495 = vmatpush1.msra.mxu0 0.0
      %496 = vmatprep.subr.mxu0 0.0
      %497 = vmatpush1.msra.mxu0 0.0
      %498 = vmatprep.subr.mxu0 0.0
      %499 = vmatpush1.msra.mxu0 0.0
      %500 = vmatprep.subr.mxu0 0.0
      %501 = vmatpush1.msra.mxu0 0.0
      %502 = vmatprep.subr.mxu0 0.0
      %503 = vmatpush1.msra.mxu0 0.0
      %504 = vmatprep.subr.mxu0 0.0
      %505 = vmatpush1.msra.mxu0 0.0
      %506 = vmatprep.subr.mxu0 0.0
      %507 = vmatpush1.msra.mxu0 0.0
      %508 = vmatprep.subr.mxu0 0.0
      %509 = vmatpush1.msra.mxu0 0.0
      %510 = vmatprep.subr.mxu0 0.0
      %511 = vmatpush1.msra.mxu0 0.0
      %512 = vmatprep.subr.mxu0 0.0
      %513 = vmatpush1.msra.mxu0 0.0
      %514 = vmatprep.subr.mxu0 0.0
      %515 = vmatpush1.msra.mxu0 0.0
      %516 = vmatprep.subr.mxu0 0.0
      %517 = vmatpush1.msra.mxu0 0.0
      %518 = vmatprep.subr.mxu0 0.0
      %519 = vmatpush1.msra.mxu0 0.0
      %520 = vmatprep.subr.mxu0 0.0
      %521 = vmatpush1.msra.mxu0 0.0
      %522 = vmatprep.subr.mxu0 0.0
      %523 = vmatpush1.msra.mxu0 0.0
      %524 = vmatprep.subr.mxu0 0.0
      %525 = vmatpush1.msra.mxu0 0.0
      %526 = vmatprep.subr.mxu0 0.0
      %527 = vmatpush1.msra.mxu0 0.0
      %528 = vmatprep.subr.mxu0 0.0
      %529 = vmatpush1.msra.mxu0 0.0
      %530 = vmatprep.subr.mxu0 0.0
      %531 = vmatpush1.msra.mxu0 0.0
      %532 = vmatprep.subr.mxu0 0.0
      %533 = vmatpush1.msra.mxu0 0.0
      %534 = vmatprep.subr.mxu0 0.0
      %535 = vmatpush1.msra.mxu0 0.0
      %536 = vmatprep.subr.mxu0 0.0
      %537 = vmatpush1.msra.mxu0 0.0
      %538 = vmatprep.subr.mxu0 0.0
      %539 = vmatpush1.msra.mxu0 0.0
      %540 = vmatprep.subr.mxu0 0.0
      %541 = vmatpush1.msra.mxu0 0.0
      %542 = vmatprep.subr.mxu0 0.0
      %543 = vmatpush1.msra.mxu0 0.0
      %544 = vmatprep.subr.mxu0 0.0
      %545 = vmatpush1.msra.mxu0 0.0
      %546 = vmatprep.subr.mxu0 0.0
      %547 = vmatpush1.msra.mxu0 0.0
      %548 = vmatprep.subr.mxu0 0.0
      %549 = vmatpush1.msra.mxu0 0.0
      %550 = vmatprep.subr.mxu0 0.0
      %551 = vmatpush1.msra.mxu0 0.0
      %552 = vmatprep.mubr.f32.mxu0 0.0
      %553 = vmatmul.mubr.f32.gmra.mrb[0].mxu0 %v482
      %v554 = vpop.f32.mrb[0].mxu0
      %v555 = vadd.f32 %v479, %v554
      %v556 = vpop.f32.mrb[0].mxu0
      %557 = vdwg.mxu0
      %v558 = vxor.u32 %v555, 2147483648
      %v559 = vmul.f32 %v558, 1.442695
      %v560 = vpow.pop %v559
      %v561 = vadd.f32 %v560, 1.0
      %v562 = vrcp.pop %v561
      %v563 = vmul.f32 1.0, %v562
      %v564 = vlaneseq
      %v565 = vshrl.u32 %v564, 7
      %v566 = vsub.s32 0, %v565
      %v567 = vrot.slane %v563, %v566
      %569 = vbcast.lane.b32.xlu0 %v567, 256
      %v570 = vpop.permute.xlu0 %569
      %s572 = sor.u32 256, 8
      %573 = vbcast.lane.b32.xlu0 %v567, %s572
      %v574 = vpop.permute.xlu0 %573
      %s576 = sor.u32 256, 16
      %577 = vbcast.lane.b32.xlu0 %v567, %s576
      %v578 = vpop.permute.xlu0 %577
      %s580 = sor.u32 256, 24
      %581 = vbcast.lane.b32.xlu0 %v567, %s580
      %v582 = vpop.permute.xlu0 %581
      %s584 = sor.u32 256, 32
      %585 = vbcast.lane.b32.xlu0 %v567, %s584
      %v586 = vpop.permute.xlu0 %585
      %s588 = sor.u32 256, 40
      %589 = vbcast.lane.b32.xlu0 %v567, %s588
      %v590 = vpop.permute.xlu0 %589
      %s592 = sor.u32 256, 48
      %593 = vbcast.lane.b32.xlu0 %v567, %s592
      %v594 = vpop.permute.xlu0 %593
      %s596 = sor.u32 256, 56
      %597 = vbcast.lane.b32.xlu0 %v567, %s596
      %v598 = vpop.permute.xlu0 %597
      %v599 = vlaneseq
      %v600 = vshrl.u32 %v599, 7
      %v601 = vsub.s32 1, %v600
      %v602 = vrot.slane %v563, %v601
      %604 = vbcast.lane.b32.xlu0 %v602, 256
      %v605 = vpop.permute.xlu0 %604
      %s607 = sor.u32 256, 8
      %608 = vbcast.lane.b32.xlu0 %v602, %s607
      %v609 = vpop.permute.xlu0 %608
      %s611 = sor.u32 256, 16
      %612 = vbcast.lane.b32.xlu0 %v602, %s611
      %v613 = vpop.permute.xlu0 %612
      %s615 = sor.u32 256, 24
      %616 = vbcast.lane.b32.xlu0 %v602, %s615
      %v617 = vpop.permute.xlu0 %616
      %s619 = sor.u32 256, 32
      %620 = vbcast.lane.b32.xlu0 %v602, %s619
      %v621 = vpop.permute.xlu0 %620
      %s623 = sor.u32 256, 40
      %624 = vbcast.lane.b32.xlu0 %v602, %s623
      %v625 = vpop.permute.xlu0 %624
      %s627 = sor.u32 256, 48
      %628 = vbcast.lane.b32.xlu0 %v602, %s627
      %v629 = vpop.permute.xlu0 %628
      %s631 = sor.u32 256, 56
      %632 = vbcast.lane.b32.xlu0 %v602, %s631
      %v633 = vpop.permute.xlu0 %632
      %v634 = vmul.f32 %v179, %v570
      %v635 = vmul.f32 %v180, %v570
      %v636 = vmul.f32 %v181, %v574
      %v637 = vmul.f32 %v182, %v574
      %v638 = vmul.f32 %v183, %v578
      %v639 = vmul.f32 %v184, %v578
      %v640 = vmul.f32 %v185, %v582
      %v641 = vmul.f32 %v186, %v582
      %v642 = vmul.f32 %v187, %v586
      %v643 = vmul.f32 %v188, %v586
      %v644 = vmul.f32 %v189, %v590
      %v645 = vmul.f32 %v190, %v590
      %v646 = vmul.f32 %v191, %v594
      %v647 = vmul.f32 %v192, %v594
      %v648 = vmul.f32 %v193, %v598
      %v649 = vmul.f32 %v194, %v598
      %v650 = vmul.f32 %v195, %v605
      %v651 = vmul.f32 %v196, %v605
      %v652 = vmul.f32 %v197, %v609
      %v653 = vmul.f32 %v198, %v609
      %v654 = vmul.f32 %v199, %v613
      %v655 = vmul.f32 %v200, %v613
      %v656 = vmul.f32 %v201, %v617
      %v657 = vmul.f32 %v202, %v617
      %v658 = vmul.f32 %v203, %v621
      %v659 = vmul.f32 %v204, %v621
      %v660 = vmul.f32 %v205, %v625
      %v661 = vmul.f32 %v206, %v625
      %v662 = vmul.f32 %v207, %v629
      %v663 = vmul.f32 %v208, %v629
      %v664 = vmul.f32 %v209, %v633
      %v665 = vmul.f32 %v210, %v633
      %666 = vst [vmem:[%s177] sm:$0xff] %v634
      %667 = vst [vmem:[%s177 + $0x8] sm:$0xff] %v635
      %668 = vst [vmem:[%s177 + $0x10] sm:$0xff] %v636
      %669 = vst [vmem:[%s177 + $0x18] sm:$0xff] %v637
      %670 = vst [vmem:[%s177 + $0x20] sm:$0xff] %v638
      %671 = vst [vmem:[%s177 + $0x28] sm:$0xff] %v639
      %672 = vst [vmem:[%s177 + $0x30] sm:$0xff] %v640
      %673 = vst [vmem:[%s177 + $0x38] sm:$0xff] %v641
      %674 = vst [vmem:[%s177 + $0x40] sm:$0xff] %v642
      %675 = vst [vmem:[%s177 + $0x48] sm:$0xff] %v643
      %676 = vst [vmem:[%s177 + $0x50] sm:$0xff] %v644
      %677 = vst [vmem:[%s177 + $0x58] sm:$0xff] %v645
      %678 = vst [vmem:[%s177 + $0x60] sm:$0xff] %v646
      %679 = vst [vmem:[%s177 + $0x68] sm:$0xff] %v647
      %680 = vst [vmem:[%s177 + $0x70] sm:$0xff] %v648
      %681 = vst [vmem:[%s177 + $0x78] sm:$0xff] %v649
      %682 = vst [vmem:[%s177 + $0x80] sm:$0xff] %v650
      %683 = vst [vmem:[%s177 + $0x88] sm:$0xff] %v651
      %684 = vst [vmem:[%s177 + $0x90] sm:$0xff] %v652
      %685 = vst [vmem:[%s177 + $0x98] sm:$0xff] %v653
      %686 = vst [vmem:[%s177 + $0xa0] sm:$0xff] %v654
      %687 = vst [vmem:[%s177 + $0xa8] sm:$0xff] %v655
      %688 = vst [vmem:[%s177 + $0xb0] sm:$0xff] %v656
      %689 = vst [vmem:[%s177 + $0xb8] sm:$0xff] %v657
      %690 = vst [vmem:[%s177 + $0xc0] sm:$0xff] %v658
      %691 = vst [vmem:[%s177 + $0xc8] sm:$0xff] %v659
      %692 = vst [vmem:[%s177 + $0xd0] sm:$0xff] %v660
      %693 = vst [vmem:[%s177 + $0xd8] sm:$0xff] %v661
      %694 = vst [vmem:[%s177 + $0xe0] sm:$0xff] %v662
      %695 = vst [vmem:[%s177 + $0xe8] sm:$0xff] %v663
      %696 = vst [vmem:[%s177 + $0xf0] sm:$0xff] %v664
      %697 = vst [vmem:[%s177 + $0xf8] sm:$0xff] %v665
      %s698 = smul.u32 2, %s14
      %p699 = scmp.lt.s32.totalorder %s698, 3
      %s700 = scalar_select %p699, %s698, 3
      %s701 = smul.addr %s700, 16
      %s702 = smul.addr %s701, 8
      %s703 = scalar_lea.vmem %s3, %s702
      // Predicated region
      $region33: #{se_attention.1} parent=31 // pred_check
        %p704 = pneg %p100
      $region34: #{se_attention.1} parent=31 // pred_check_branch
        %706 = sbr.rel (%p704) target = $region36
      $region35: #{se_attention.1} parent=31 // pred_region
        %s707 = smul.u32 2, %s14
      $region36: #{se_attention.1} parent=31 // pred_fallthru
        _
    $region32: #{se_attention.1} parent=5 // pred_fallthru
      _
    %p708 = scmp.le.s32.totalorder 2, %s9
    // Predicated region
    $region37: #{se_attention.1} parent=5 // pred_check
      %p709 = pneg %p708
    $region38: #{se_attention.1} parent=5 // pred_check_branch
      %711 = sbr.rel (%p709) target = $region40
    $region39: #{se_attention.1} parent=5 // pred_region
      %s712 = ssub.s32 %s9, 2
      // Predicated region
      $region41: #{se_attention.1} parent=39 // pred_check
        %p713 = pneg %p106
      $region42: #{se_attention.1} parent=39 // pred_check_branch
        %715 = sbr.rel (%p713) target = $region44
      $region43: #{se_attention.1} parent=39 // pred_region
        %s716 = smul.u32 2, %s15
        %p717 = scmp.lt.s32.totalorder %s716, 3
        %s718 = scalar_select %p717, %s716, 3
        %s719 = smul.addr %s718, 16
        %s720 = smul.addr %s719, 8
        %s721 = scalar_lea.vmem %s3, %s720
      $region44: #{se_attention.1} parent=39 // pred_fallthru
        _
    $region40: #{se_attention.1} parent=5 // pred_fallthru
      _
  $region6: #{se_attention.1} parent=0 // loop_footer
    %s13 = sadd.s32 1, %s9
  $region7: #{se_attention.1} parent=0 // loop_footer_branch
    %8 = sbr.rel target = $region3
  $region8: #{se_attention.1} parent=0 // loop_exit
    _

</llo_original>
